<compile_context>
chip_gen: v5e
topology: v5e:2x2
jax: 0.10.0
libtpu: 0.0.40
codegen_flags: <defaults>
</compile_context>

<pallas_src>
import functools

import jax
import jax.numpy as jnp
from jax.experimental import pallas as pl
from jax.experimental.pallas import tpu as pltpu

_LANE = 128     # lane width (last-dim granularity)
_SUBLANE = 8    # sublane width (second-to-last-dim granularity)

# Conservative budget for the fused fast path (single-buffered weights +
# activation tiles).  Fits comfortably inside the default scoped VMEM on every
# generation, including v7x (64 MiB physical / 32 MiB default scoped).
_FUSED_VMEM_BUDGET = 24 << 20


def _round_up(x, m):
    return ((x + m - 1) // m) * m


# --------------------------------------------------------------------------
# One-time parameter preparation (hoisted out of the per-call forward path).
# --------------------------------------------------------------------------
def prepare_dnn_params(params):
    """Pad every weight/bias to lane-dense (multiples of 128) and cast weights
    to bf16 ONCE.  Returns (weights, biases, out_dim).

    Doing this per forward call costs more HBM traffic than the kernel itself
    for weight-dominated MLPs, so call this once and reuse the result.
    Zero padding is mathematically inert (padded rows/cols of W and b are 0).
    """
    dims = [params[0][0].shape[0]] + [w.shape[1] for (w, _) in params]
    dims_pad = [_round_up(d, _LANE) for d in dims]
    weights, biases = [], []
    for l, (w, b) in enumerate(params):
        kin, nout = w.shape
        w_pad = jnp.zeros((dims_pad[l], dims_pad[l + 1]), jnp.bfloat16)
        w_pad = w_pad.at[:kin, :nout].set(w.astype(jnp.bfloat16))
        b_pad = jnp.zeros((1, dims_pad[l + 1]), jnp.float32)
        b_pad = b_pad.at[0, :nout].set(b.astype(jnp.float32))
        weights.append(w_pad)
        biases.append(b_pad)
    return tuple(weights), tuple(biases), dims[-1]


# --------------------------------------------------------------------------
# Fused fast path: all layers in one pallas_call (activations stay in VMEM).
# --------------------------------------------------------------------------
def _make_fused_dnn_kernel(num_layers):
    """relu(... relu(relu(x@w1+b1)@w2+b2) ...) in one body."""

    def kernel(x_ref, *refs):
        o_ref = refs[-1]
        wb_refs = refs[:-1]                 # (w0, b0, w1, b1, ...)
        h = x_ref[...]                      # already bf16
        for l in range(num_layers):
            w = wb_refs[2 * l][...]         # (K_pad, N_pad) bf16
            b = wb_refs[2 * l + 1][...]     # (1, N_pad)     f32
            acc = jnp.dot(h, w, preferred_element_type=jnp.float32)
            acc = jnp.maximum(acc + b, 0.0)       # bias + ReLU in f32
            if l + 1 < num_layers:
                h = acc.astype(jnp.bfloat16)      # stays in VMEM/vregs
            else:
                o_ref[...] = acc.astype(o_ref.dtype)

    return kernel


def _pick_tm(M_pad, dims_pad, weight_bytes):
    """Batch-tile size: as large as the VMEM budget allows (cap 512 = measured
    single-TC sweet spot), but split big batches into >=2 blocks so the
    "parallel" grid axis can shard across v7x's two TensorCores."""
    per_row = (2 * dims_pad[0] * 2          # double-buffered bf16 input tile
               + 2 * dims_pad[-1] * 4       # double-buffered f32 output tile
               + 2 * max(dims_pad) * 4)     # f32 temporaries / accumulators
    avail = max(_FUSED_VMEM_BUDGET - weight_bytes, 1 << 20)
    tm_cap = min(512, (avail // per_row) // _SUBLANE * _SUBLANE)
    tm_cap = max(tm_cap, _SUBLANE)
    if M_pad <= tm_cap:
        # Whole batch fits one tile.  Split in two for megacore only when the
        # batch is big enough to matter; tiny batches stay a single block.
        if M_pad >= 256 and (M_pad // 2) % _SUBLANE == 0:
            return M_pad // 2
        return M_pad
    tm = tm_cap
    while M_pad % tm:
        tm -= _SUBLANE
    return max(tm, _SUBLANE)


def _fused_forward(x_pad, weights, biases, single_buffer_weights):
    M_pad, K_pad = x_pad.shape
    num_layers = len(weights)
    dims_pad = [K_pad] + [int(w.shape[1]) for w in weights]
    N_pad = dims_pad[-1]

    weight_bytes = sum(int(w.size) * 2 + int(b.size) * 4
                       for w, b in zip(weights, biases))
    tm = _pick_tm(M_pad, dims_pad, weight_bytes)
    grid = (M_pad // tm,)

    # Weights/biases have a constant index_map -> request single buffering to
    # halve their VMEM residency (binding constraint on v7x / default v5e).
    wb_kwargs = (dict(pipeline_mode=pl.Buffered(1))
                 if single_buffer_weights else {})

    in_specs = [pl.BlockSpec((tm, K_pad), lambda i: (i, 0))]
    flat_wb = []
    for (w, b) in zip(weights, biases):
        in_specs.append(pl.BlockSpec(w.shape, lambda i: (0, 0), **wb_kwargs))
        in_specs.append(pl.BlockSpec(b.shape, lambda i: (0, 0), **wb_kwargs))
        flat_wb.extend([w, b])
    out_specs = pl.BlockSpec((tm, N_pad), lambda i: (i, 0))

    # Explicit VMEM budget from the actual footprint, clamped to a range that
    # is valid on every generation (>= v5e's 16 MiB default, < v7x's 64 MiB).
    footprint = (weight_bytes
                 + 2 * tm * K_pad * 2
                 + 2 * tm * N_pad * 4
                 + 2 * tm * max(dims_pad) * 4)
    vmem_limit = int(min(max(2 * footprint, 16 << 20), 48 << 20))

    flops = sum(2 * M_pad * dims_pad[l] * dims_pad[l + 1]
                for l in range(num_layers))
    bytes_accessed = int(x_pad.size) * 2 + weight_bytes + M_pad * N_pad * 4

    return pl.pallas_call(
        _make_fused_dnn_kernel(num_layers),
        out_shape=jax.ShapeDtypeStruct((M_pad, N_pad), jnp.float32),
        grid_spec=pl.GridSpec(grid=grid, in_specs=in_specs,
                              out_specs=out_specs),
        compiler_params=pltpu.CompilerParams(
            dimension_semantics=("parallel",),
            vmem_limit_bytes=vmem_limit),
        cost_estimate=pl.CostEstimate(
            flops=flops, transcendentals=0, bytes_accessed=bytes_accessed),
    )(x_pad, *flat_wb)


# --------------------------------------------------------------------------
# Fallback path: per-layer tiled matmul + bias + ReLU (handles weight sets
# larger than the fused VMEM budget).
# --------------------------------------------------------------------------
def _layer_kernel(x_ref, w_ref, b_ref, o_ref, acc_ref):
    @pl.when(pl.program_id(2) == 0)
    def _():
        acc_ref[...] = jnp.zeros_like(acc_ref)

    acc_ref[...] += jnp.dot(x_ref[...], w_ref[...],
                            preferred_element_type=jnp.float32)

    @pl.when(pl.program_id(2) == pl.num_programs(2) - 1)
    def _():
        o_ref[...] = jnp.maximum(acc_ref[...] + b_ref[...],
                                 0.0).astype(o_ref.dtype)


def _pick_feature_tile(dim_pad, cap):
    t = min(cap, dim_pad)
    t = max(_LANE, (t // _LANE) * _LANE)
    while dim_pad % t:
        t -= _LANE
    return t


def _pick_batch_tile(M_pad, cap):
    t = min(cap, M_pad)
    t = max(_SUBLANE, (t // _SUBLANE) * _SUBLANE)
    while M_pad % t:
        t -= _SUBLANE
    return t


def _tiled_layer(x_pad, w_pad, b_pad, out_dtype):
    M_pad, K_pad = x_pad.shape
    N_pad = w_pad.shape[1]
    tm = _pick_batch_tile(M_pad, 256)
    tk = _pick_feature_tile(K_pad, 512)
    tn = _pick_feature_tile(N_pad, 512)
    grid = (M_pad // tm, N_pad // tn, K_pad // tk)

    footprint = (2 * tm * tk * x_pad.dtype.itemsize
                 + 2 * tk * tn * 2
                 + 2 * tn * 4
                 + 2 * tm * tn * jnp.dtype(out_dtype).itemsize
                 + tm * tn * 4)
    vmem_limit = int(min(max(2 * footprint, 16 << 20), 48 << 20))

    return pl.pallas_call(
        _layer_kernel,
        out_shape=jax.ShapeDtypeStruct((M_pad, N_pad), out_dtype),
        grid_spec=pltpu.PrefetchScalarGridSpec(
            num_scalar_prefetch=0,
            grid=grid,
            in_specs=[pl.BlockSpec((tm, tk), lambda i, j, k: (i, k)),
                      pl.BlockSpec((tk, tn), lambda i, j, k: (k, j)),
                      pl.BlockSpec((1, tn), lambda i, j, k: (0, j))],
            out_specs=pl.BlockSpec((tm, tn), lambda i, j, k: (i, j)),
            scratch_shapes=[pltpu.VMEM((tm, tn), jnp.float32)]),
        compiler_params=pltpu.CompilerParams(
            dimension_semantics=("parallel", "parallel", "arbitrary"),
            vmem_limit_bytes=vmem_limit),
    )(x_pad, w_pad, b_pad)


# --------------------------------------------------------------------------
# Forward entry point (hot path: only pads/casts x, everything else is ready).
# --------------------------------------------------------------------------
@functools.partial(jax.jit, static_argnames=("out_dim", "single_buffer_weights"))
def dnn_forward(x, weights, biases, *, out_dim, single_buffer_weights=True):
    """out = relu(... relu(x @ w1 + b1) ... @ wL + bL).

    x: (M, K) f32; weights/biases: outputs of prepare_dnn_params.
    For best throughput at tiny per-call batches, batch multiple independent
    forwards into M before calling (launch/DMA overhead dominates otherwise).
    """
    M, K = x.shape
    K_pad = int(weights[0].shape[0])
    M_pad = _round_up(max(M, _SUBLANE), _SUBLANE)

    # Pad + cast in one XLA op: bf16 input halves DMA bytes & VMEM footprint.
    x_pad = jnp.pad(x.astype(jnp.bfloat16), ((0, M_pad - M), (0, K_pad - K)))

    weight_bytes = sum(int(w.size) * 2 + int(b.size) * 4
                       for w, b in zip(weights, biases))

    if weight_bytes <= _FUSED_VMEM_BUDGET - (4 << 20):
        out_pad = _fused_forward(x_pad, weights, biases, single_buffer_weights)
    else:
        # Weights too large to keep the whole stack resident: per-layer tiled
        # kernels (intermediate activations kept bf16 for the next layer).
        h = x_pad
        n = len(weights)
        for l, (w, b) in enumerate(zip(weights, biases)):
            h = _tiled_layer(h, w, b,
                             jnp.float32 if l == n - 1 else jnp.bfloat16)
        out_pad = h

    # Note: padded batch rows hold relu(bias) != 0 inside out_pad; they are
    # sliced off here, so the returned result is exact.
    return out_pad[:M, :out_dim]


# --------------------------------------------------------------------------
# Init matching the PyTorch module.
# --------------------------------------------------------------------------
def init_dnn_params(key, inputs_dim, hidden_units):
    """weight ~ Normal(0, 0.0001); bias ~ Uniform(-1/sqrt(fan_in), +1/sqrt(fan_in)).
    Weights returned already transposed to (in, out)."""
    dims = [inputs_dim] + list(hidden_units)
    params = []
    for i in range(len(dims) - 1):
        key, kw, kb = jax.random.split(key, 3)
        fan_in, fan_out = dims[i], dims[i + 1]
        w = 0.0001 * jax.random.normal(kw, (fan_in, fan_out), dtype=jnp.float32)
        bound = 1.0 / (fan_in ** 0.5)
        b = jax.random.uniform(kb, (fan_out,), dtype=jnp.float32,
                               minval=-bound, maxval=bound)
        params.append((w, b))
    return params


if __name__ == "__main__":
    # Small shapes consistent with the module: batch=8, inputs_dim=32,
    # hidden_units=(64, 32).
    batch = 8
    inputs_dim = 32
    hidden_units = (64, 32)
    dropout_rate = 0.5  # has no effect on the forward output
    # TODO(synk): dropout intentionally omitted — `fc - self.dropout(fc)` in the
    # original forward discards its result, so it never affects the output.

    key = jax.random.PRNGKey(0)
    key, kx = jax.random.split(key)
    x = jax.random.normal(kx, (batch, inputs_dim), dtype=jnp.float32)
    params = init_dnn_params(key, inputs_dim, hidden_units)

    # One-time parameter preparation (hoisted out of the per-call path).
    weights, biases, out_dim = prepare_dnn_params(params)
    (weights, biases) = jax.block_until_ready((weights, biases))

    try:
        out = jax.block_until_ready(
            dnn_forward(x, weights, biases, out_dim=out_dim))
    except Exception:
        # Graceful degradation: retry with default double-buffered weight
        # specs if this JAX build rejects pipeline_mode=pl.Buffered(1).
        out = jax.block_until_ready(
            dnn_forward(x, weights, biases, out_dim=out_dim,
                        single_buffer_weights=False))

    # Reference: TRUE f32 math of the original module (Linear -> ReLU).
    ref = x
    for (w, b) in params:
        ref = jnp.maximum(ref @ w + b, 0.0)

    assert out.shape == (batch, hidden_units[-1])
    max_err = float(jnp.max(jnp.abs(out - ref)))
    assert max_err < 1e-3, max_err

    print("KERNEL_OK")
</pallas_src>

<mosaic_0001>
module attributes {stable_mosaic.version = 11 : i64} {
  func.func @kernel(%arg0: i32, %arg1: memref<8x128xbf16, #tpu.memory_space<vmem>>, %arg2: memref<128x128xbf16, #tpu.memory_space<vmem>>, %arg3: memref<1x128xf32, #tpu.memory_space<vmem>>, %arg4: memref<128x128xbf16, #tpu.memory_space<vmem>>, %arg5: memref<1x128xf32, #tpu.memory_space<vmem>>, %arg6: memref<8x128xf32, #tpu.memory_space<vmem>>) attributes {dimension_semantics = [#tpu.dimension_semantics<parallel>], iteration_bounds = array<i64: 1>, scalar_prefetch = 0 : i64, scratch_operands = 0 : i64, tpu.core_type = #tpu.core_type<tc>, window_params = [{transform_indices = @transform_0, window_bounds = array<i64: 8, 128>}, {pipeline_mode = #tpu.pipeline_mode<synchronous>, transform_indices = @transform_1, window_bounds = array<i64: 128, 128>}, {pipeline_mode = #tpu.pipeline_mode<synchronous>, transform_indices = @transform_2, window_bounds = array<i64: 1, 128>}, {pipeline_mode = #tpu.pipeline_mode<synchronous>, transform_indices = @transform_3, window_bounds = array<i64: 128, 128>}, {pipeline_mode = #tpu.pipeline_mode<synchronous>, transform_indices = @transform_4, window_bounds = array<i64: 1, 128>}, {transform_indices = @transform_5, window_bounds = array<i64: 8, 128>}]} {
    %c0 = arith.constant 0 : index
    %c0_0 = arith.constant 0 : index
    %0 = vector.load %arg1[%c0, %c0_0] : memref<8x128xbf16, #tpu.memory_space<vmem>>, vector<8x128xbf16>
    %c0_1 = arith.constant 0 : index
    %c0_2 = arith.constant 0 : index
    %1 = vector.load %arg2[%c0_1, %c0_2] : memref<128x128xbf16, #tpu.memory_space<vmem>>, vector<128x128xbf16>
    %c0_3 = arith.constant 0 : index
    %c0_4 = arith.constant 0 : index
    %2 = vector.load %arg3[%c0_3, %c0_4] : memref<1x128xf32, #tpu.memory_space<vmem>>, vector<1x128xf32>
    %cst = arith.constant dense<0.000000e+00> : vector<8x128xf32>
    %3 = tpu.matmul %0, %1, %cst {dimension_numbers = #tpu.dot_dimension_numbers<[1], [0], [0], [1], [0, 0, 1, 1], [], []>} : vector<8x128xbf16>, vector<128x128xbf16>, vector<8x128xf32> -> vector<8x128xf32>
    %4 = vector.broadcast %2 : vector<1x128xf32> to vector<8x128xf32>
    %5 = arith.addf %3, %4 : vector<8x128xf32>
    %cst_5 = arith.constant 0.000000e+00 : f32
    %6 = vector.broadcast %cst_5 : f32 to vector<8x128xf32>
    %7 = arith.maximumf %5, %6 : vector<8x128xf32>
    %8 = arith.truncf %7 : vector<8x128xf32> to vector<8x128xbf16>
    %c0_6 = arith.constant 0 : index
    %c0_7 = arith.constant 0 : index
    %9 = vector.load %arg4[%c0_6, %c0_7] : memref<128x128xbf16, #tpu.memory_space<vmem>>, vector<128x128xbf16>
    %c0_8 = arith.constant 0 : index
    %c0_9 = arith.constant 0 : index
    %10 = vector.load %arg5[%c0_8, %c0_9] : memref<1x128xf32, #tpu.memory_space<vmem>>, vector<1x128xf32>
    %cst_10 = arith.constant dense<0.000000e+00> : vector<8x128xf32>
    %11 = tpu.matmul %8, %9, %cst_10 {dimension_numbers = #tpu.dot_dimension_numbers<[1], [0], [0], [1], [0, 0, 1, 1], [], []>} : vector<8x128xbf16>, vector<128x128xbf16>, vector<8x128xf32> -> vector<8x128xf32>
    %12 = vector.broadcast %10 : vector<1x128xf32> to vector<8x128xf32>
    %13 = arith.addf %11, %12 : vector<8x128xf32>
    %cst_11 = arith.constant 0.000000e+00 : f32
    %14 = vector.broadcast %cst_11 : f32 to vector<8x128xf32>
    %15 = arith.maximumf %13, %14 : vector<8x128xf32>
    %c0_12 = arith.constant 0 : index
    %c0_13 = arith.constant 0 : index
    %16 = vector.load %arg6[%c0_12, %c0_13] : memref<8x128xf32, #tpu.memory_space<vmem>>, vector<8x128xf32>
    tpu.vector_store %arg6[%c0_12, %c0_13], %15 {strides = array<i32>} : memref<8x128xf32, #tpu.memory_space<vmem>>, vector<8x128xf32>,
    return
  }
  func.func @transform_0(%arg0: i32) -> (i32, i32) {
    %c0_i32 = arith.constant 0 : i32
    %c0_i32_0 = arith.constant 0 : i32
    return %arg0, %c0_i32 : i32, i32
  }
  func.func @transform_1(%arg0: i32) -> (i32, i32) {
    %c0_i32 = arith.constant 0 : i32
    %c0_i32_0 = arith.constant 0 : i32
    %c0_i32_1 = arith.constant 0 : i32
    return %c0_i32, %c0_i32_0 : i32, i32
  }
  func.func @transform_2(%arg0: i32) -> (i32, i32) {
    %c0_i32 = arith.constant 0 : i32
    %c0_i32_0 = arith.constant 0 : i32
    %c0_i32_1 = arith.constant 0 : i32
    return %c0_i32, %c0_i32_0 : i32, i32
  }
  func.func @transform_3(%arg0: i32) -> (i32, i32) {
    %c0_i32 = arith.constant 0 : i32
    %c0_i32_0 = arith.constant 0 : i32
    %c0_i32_1 = arith.constant 0 : i32
    return %c0_i32, %c0_i32_0 : i32, i32
  }
  func.func @transform_4(%arg0: i32) -> (i32, i32) {
    %c0_i32 = arith.constant 0 : i32
    %c0_i32_0 = arith.constant 0 : i32
    %c0_i32_1 = arith.constant 0 : i32
    return %c0_i32, %c0_i32_0 : i32, i32
  }
  func.func @transform_5(%arg0: i32) -> (i32, i32) {
    %c0_i32 = arith.constant 0 : i32
    %c0_i32_0 = arith.constant 0 : i32
    return %arg0, %c0_i32 : i32, i32
  }
}

module attributes {stable_mosaic.version = 11 : i64} {
  func.func @kernel(%arg0: i32, %arg1: memref<8x128xbf16, #tpu.memory_space<vmem>>, %arg2: memref<128x128xbf16, #tpu.memory_space<vmem>>, %arg3: memref<1x128xf32, #tpu.memory_space<vmem>>, %arg4: memref<128x128xbf16, #tpu.memory_space<vmem>>, %arg5: memref<1x128xf32, #tpu.memory_space<vmem>>, %arg6: memref<8x128xf32, #tpu.memory_space<vmem>>) attributes {dimension_semantics = [#tpu.dimension_semantics<parallel>], iteration_bounds = array<i64: 1>, scalar_prefetch = 0 : i64, scratch_operands = 0 : i64, tpu.core_type = #tpu.core_type<tc>, window_params = [{transform_indices = @transform_0, window_bounds = array<i64: 8, 128>}, {pipeline_mode = #tpu.pipeline_mode<synchronous>, transform_indices = @transform_1, window_bounds = array<i64: 128, 128>}, {pipeline_mode = #tpu.pipeline_mode<synchronous>, transform_indices = @transform_2, window_bounds = array<i64: 1, 128>}, {pipeline_mode = #tpu.pipeline_mode<synchronous>, transform_indices = @transform_3, window_bounds = array<i64: 128, 128>}, {pipeline_mode = #tpu.pipeline_mode<synchronous>, transform_indices = @transform_4, window_bounds = array<i64: 1, 128>}, {transform_indices = @transform_5, window_bounds = array<i64: 8, 128>}]} {
    %c0 = arith.constant 0 : index
    %c0_0 = arith.constant 0 : index
    %0 = vector.load %arg1[%c0, %c0_0] : memref<8x128xbf16, #tpu.memory_space<vmem>>, vector<8x128xbf16>
    %c0_1 = arith.constant 0 : index
    %c0_2 = arith.constant 0 : index
    %1 = vector.load %arg2[%c0_1, %c0_2] : memref<128x128xbf16, #tpu.memory_space<vmem>>, vector<128x128xbf16>
    %c0_3 = arith.constant 0 : index
    %c0_4 = arith.constant 0 : index
    %2 = vector.load %arg3[%c0_3, %c0_4] : memref<1x128xf32, #tpu.memory_space<vmem>>, vector<1x128xf32>
    %cst = arith.constant dense<0.000000e+00> : vector<8x128xf32>
    %3 = tpu.matmul %0, %1, %cst {dimension_numbers = #tpu.dot_dimension_numbers<[1], [0], [0], [1], [0, 0, 1, 1], [], []>} : vector<8x128xbf16>, vector<128x128xbf16>, vector<8x128xf32> -> vector<8x128xf32>
    %4 = vector.broadcast %2 : vector<1x128xf32> to vector<8x128xf32>
    %5 = arith.addf %3, %4 : vector<8x128xf32>
    %cst_5 = arith.constant 0.000000e+00 : f32
    %6 = vector.broadcast %cst_5 : f32 to vector<8x128xf32>
    %7 = arith.maximumf %5, %6 : vector<8x128xf32>
    %8 = arith.truncf %7 : vector<8x128xf32> to vector<8x128xbf16>
    %c0_6 = arith.constant 0 : index
    %c0_7 = arith.constant 0 : index
    %9 = vector.load %arg4[%c0_6, %c0_7] : memref<128x128xbf16, #tpu.memory_space<vmem>>, vector<128x128xbf16>
    %c0_8 = arith.constant 0 : index
    %c0_9 = arith.constant 0 : index
    %10 = vector.load %arg5[%c0_8, %c0_9] : memref<1x128xf32, #tpu.memory_space<vmem>>, vector<1x128xf32>
    %cst_10 = arith.constant dense<0.000000e+00> : vector<8x128xf32>
    %11 = tpu.matmul %8, %9, %cst_10 {dimension_numbers = #tpu.dot_dimension_numbers<[1], [0], [0], [1], [0, 0, 1, 1], [], []>} : vector<8x128xbf16>, vector<128x128xbf16>, vector<8x128xf32> -> vector<8x128xf32>
    %12 = vector.broadcast %10 : vector<1x128xf32> to vector<8x128xf32>
    %13 = arith.addf %11, %12 : vector<8x128xf32>
    %cst_11 = arith.constant 0.000000e+00 : f32
    %14 = vector.broadcast %cst_11 : f32 to vector<8x128xf32>
    %15 = arith.maximumf %13, %14 : vector<8x128xf32>
    %c0_12 = arith.constant 0 : index
    %c0_13 = arith.constant 0 : index
    %16 = vector.load %arg6[%c0_12, %c0_13] : memref<8x128xf32, #tpu.memory_space<vmem>>, vector<8x128xf32>
    tpu.vector_store %arg6[%c0_12, %c0_13], %15 {strides = array<i32>} : memref<8x128xf32, #tpu.memory_space<vmem>>, vector<8x128xf32>,
    return
  }
  func.func @transform_0(%arg0: i32) -> (i32, i32) {
    %c0_i32 = arith.constant 0 : i32
    %c0_i32_0 = arith.constant 0 : i32
    return %arg0, %c0_i32 : i32, i32
  }
  func.func @transform_1(%arg0: i32) -> (i32, i32) {
    %c0_i32 = arith.constant 0 : i32
    %c0_i32_0 = arith.constant 0 : i32
    %c0_i32_1 = arith.constant 0 : i32
    return %c0_i32, %c0_i32_0 : i32, i32
  }
  func.func @transform_2(%arg0: i32) -> (i32, i32) {
    %c0_i32 = arith.constant 0 : i32
    %c0_i32_0 = arith.constant 0 : i32
    %c0_i32_1 = arith.constant 0 : i32
    return %c0_i32, %c0_i32_0 : i32, i32
  }
  func.func @transform_3(%arg0: i32) -> (i32, i32) {
    %c0_i32 = arith.constant 0 : i32
    %c0_i32_0 = arith.constant 0 : i32
    %c0_i32_1 = arith.constant 0 : i32
    return %c0_i32, %c0_i32_0 : i32, i32
  }
  func.func @transform_4(%arg0: i32) -> (i32, i32) {
    %c0_i32 = arith.constant 0 : i32
    %c0_i32_0 = arith.constant 0 : i32
    %c0_i32_1 = arith.constant 0 : i32
    return %c0_i32, %c0_i32_0 : i32, i32
  }
  func.func @transform_5(%arg0: i32) -> (i32, i32) {
    %c0_i32 = arith.constant 0 : i32
    %c0_i32_0 = arith.constant 0 : i32
    return %arg0, %c0_i32 : i32, i32
  }
}

</mosaic_0001>

<llo_original>
// kernel: dnn_forward.1
$region0: #{dnn_forward.1}
  #allocation0 [shape = 'u32[]', space=smem, size = 0x4, offset = 0x4, fixed_abs, tag = 'smem constant byte address 0x4 - core index']
  #allocation1 [shape = 'u32[72,128]{1,0:T(1,128)}', space=vmem, size = 0x9000, scoped, tag = 'internal scratch']
  %s0 = inlined_call_operand.vmem [shape: bf16[8,128], index: 0, kind: input, shape index: {}]
  %s1 = inlined_call_operand.hbm [shape: bf16[128,128], index: 1, kind: input, shape index: {}]
  %s2 = inlined_call_operand.vmem [shape: f32[1,128], index: 2, kind: input, shape index: {}]
  %s3 = inlined_call_operand.hbm [shape: bf16[128,128], index: 3, kind: input, shape index: {}]
  %s4 = inlined_call_operand.vmem [shape: f32[1,128], index: 4, kind: input, shape index: {}]
  %s5 = inlined_call_operand.hbm [shape: f32[8,128], index: 5, kind: output, shape index: {}]
  %s6 = sld [smem:[#allocation0]]
  $region38: #{dnn_forward.1} parent=0
    _
  %s8 = ssub.s32 1, %s6
  %s9 = scalar_select 0, %s8, %s6
  $region1: #{dnn_forward.1} parent=0
    #allocation2 [shape = 'u8[32768]{0}', space=vmem, size = 0x8000, scoped, tag = 'input window, operand 1, single buffered']
    #allocation3 [shape = 's32[1]{0}', space=sflag, size = 0x4, scoped, tag = 'scoped memory for dnn_forward.1']
    #allocation4 [shape = 's32[1]{0}', space=sflag, size = 0x4, scoped, tag = 'scoped memory for dnn_forward.1']
    #allocation5 [shape = 'u8[32768]{0}', space=vmem, size = 0x8000, scoped, tag = 'input window, operand 3, single buffered']
    #allocation6 [shape = 's32[1]{0}', space=sflag, size = 0x4, scoped, tag = 'scoped memory for dnn_forward.1']
    #allocation7 [shape = 'u8[4096]{0}', space=vmem, size = 0x1000, scoped, tag = 'output window, operand 0, single buffered']
    %10 = vsyncpa [#allocation3], 0
    %11 = vsyncpa [#allocation6], 0
    %12 = vsyncpa [#allocation4], 0
    // Predicated region
    $region2: #{dnn_forward.1} parent=1 // pred_check
      _
    $region3: #{dnn_forward.1} parent=1 // pred_check_branch
      %14 = sbr.rel (0) target = $region5
    $region4: #{dnn_forward.1} parent=1 // pred_region
      _
    $region5: #{dnn_forward.1} parent=1 // pred_fallthru
      _
    // Predicated region
    $region6: #{dnn_forward.1} parent=1 // pred_check
      _
    $region7: #{dnn_forward.1} parent=1 // pred_check_branch
      %16 = sbr.rel (0) target = $region9
    $region8: #{dnn_forward.1} parent=1 // pred_region
      %18 = vsyncadd [#allocation3], 0
      %s19 = sshll.u32 %s1, 4
      %s20 = int_to_ptr.hbm [resolvable:$true] %s19
      %s21 = sshll.u32 [#allocation2], 4
      %s22 = int_to_ptr.vmem [resolvable:$true] %s21
      %27 = dma.hbm_to_vmem [thread:$0]  %s20, 1024, %s22, [#allocation3], 64, 64, 4
    $region9: #{dnn_forward.1} parent=1 // pred_fallthru
      _
    // Predicated region
    $region10: #{dnn_forward.1} parent=1 // pred_check
      _
    $region11: #{dnn_forward.1} parent=1 // pred_check_branch
      %29 = sbr.rel (0) target = $region13
    $region12: #{dnn_forward.1} parent=1 // pred_region
      _
    $region13: #{dnn_forward.1} parent=1 // pred_fallthru
      _
    // Predicated region
    $region14: #{dnn_forward.1} parent=1 // pred_check
      _
    $region15: #{dnn_forward.1} parent=1 // pred_check_branch
      %31 = sbr.rel (0) target = $region17
    $region16: #{dnn_forward.1} parent=1 // pred_region
      %33 = vsyncadd [#allocation6], 0
      %s34 = sshll.u32 %s3, 4
      %s35 = int_to_ptr.hbm [resolvable:$true] %s34
      %s36 = sshll.u32 [#allocation5], 4
      %s37 = int_to_ptr.vmem [resolvable:$true] %s36
      %42 = dma.hbm_to_vmem [thread:$0]  %s35, 1024, %s37, [#allocation6], 64, 64, 4
    $region17: #{dnn_forward.1} parent=1 // pred_fallthru
      _
    // Predicated region
    $region18: #{dnn_forward.1} parent=1 // pred_check
      _
    $region19: #{dnn_forward.1} parent=1 // pred_check_branch
      %44 = sbr.rel (0) target = $region21
    $region20: #{dnn_forward.1} parent=1 // pred_region
      _
    $region21: #{dnn_forward.1} parent=1 // pred_fallthru
      _
    // Predicated region
    $region22: #{dnn_forward.1} parent=1 // pred_check
      _
    $region23: #{dnn_forward.1} parent=1 // pred_check_branch
      %46 = sbr.rel (0) target = $region25
    $region24: #{dnn_forward.1} parent=1 // pred_region
      %48 = dma.done [#allocation3], 1024
    $region25: #{dnn_forward.1} parent=1 // pred_fallthru
      _
    // Predicated region
    $region26: #{dnn_forward.1} parent=1 // pred_check
      _
    $region27: #{dnn_forward.1} parent=1 // pred_check_branch
      %50 = sbr.rel (0) target = $region29
    $region28: #{dnn_forward.1} parent=1 // pred_region
      %52 = dma.done [#allocation6], 1024
    $region29: #{dnn_forward.1} parent=1 // pred_fallthru
      _
    %v53 = vld [vmem:[%s0] sm:$0xf]
    %v54 = vld [vmem:[#allocation2] sm:$0xf]
    %v55 = vld [vmem:[#allocation2 + $0x4] sm:$0xf]
    %v56 = vld [vmem:[#allocation2 + $0x8] sm:$0xf]
    %v57 = vld [vmem:[#allocation2 + $0xc] sm:$0xf]
    %v58 = vld [vmem:[#allocation2 + $0x10] sm:$0xf]
    %v59 = vld [vmem:[#allocation2 + $0x14] sm:$0xf]
    %v60 = vld [vmem:[#allocation2 + $0x18] sm:$0xf]
    %v61 = vld [vmem:[#allocation2 + $0x1c] sm:$0xf]
    %v62 = vld [vmem:[#allocation2 + $0x20] sm:$0xf]
    %v63 = vld [vmem:[#allocation2 + $0x24] sm:$0xf]
    %v64 = vld [vmem:[#allocation2 + $0x28] sm:$0xf]
    %v65 = vld [vmem:[#allocation2 + $0x2c] sm:$0xf]
    %v66 = vld [vmem:[#allocation2 + $0x30] sm:$0xf]
    %v67 = vld [vmem:[#allocation2 + $0x34] sm:$0xf]
    %v68 = vld [vmem:[#allocation2 + $0x38] sm:$0xf]
    %v69 = vld [vmem:[#allocation2 + $0x3c] sm:$0xf]
    %v70 = vld [vmem:[%s2] sm:$0x1]
    %v72 = vperm.slane %v70, 0
    %v90 = vunpack.c.l.b16 %v54
    %v91 = vunpack.c.l.b16 %v55
    %v92 = vunpack.c.l.b16 %v56
    %v93 = vunpack.c.l.b16 %v57
    %v94 = vunpack.c.l.b16 %v58
    %v95 = vunpack.c.l.b16 %v59
    %v96 = vunpack.c.l.b16 %v60
    %v97 = vunpack.c.l.b16 %v61
    %v98 = vunpack.c.l.b16 %v62
    %v99 = vunpack.c.l.b16 %v63
    %v100 = vunpack.c.l.b16 %v64
    %v101 = vunpack.c.l.b16 %v65
    %v102 = vunpack.c.l.b16 %v66
    %v103 = vunpack.c.l.b16 %v67
    %v104 = vunpack.c.l.b16 %v68
    %v105 = vunpack.c.l.b16 %v69
    %v106 = vpack.c.b16 %v91, %v90
    %v107 = vpack.c.b16 %v93, %v92
    %v108 = vpack.c.b16 %v95, %v94
    %v109 = vpack.c.b16 %v97, %v96
    %v110 = vpack.c.b16 %v99, %v98
    %v111 = vpack.c.b16 %v101, %v100
    %v112 = vpack.c.b16 %v103, %v102
    %v113 = vpack.c.b16 %v105, %v104
    %122 = vmatpush.bf16.msra.mxu0 %v113
    %123 = vmatpush.bf16.msra.mxu0 %v112
    %124 = vmatpush.bf16.msra.mxu0 %v111
    %125 = vmatpush.bf16.msra.mxu0 %v110
    %126 = vmatpush.bf16.msra.mxu0 %v109
    %127 = vmatpush.bf16.msra.mxu0 %v108
    %128 = vmatpush.bf16.msra.mxu0 %v107
    %129 = vmatpush.bf16.msra.mxu0 %v106
    %130 = vmatmul.bf16.gmra.mxu0 %v53
    %v131 = vpop.f32.mrf.mxu0
    %v132 = vadd.f32 %v72, %v131
    %v133 = vpop.f32.mrf.mxu0
    %134 = vdwg.mxu0
    %v135 = vmax.f32 %v132, 0.0
    %v136 = vpack.c.bf16 %v135, %v135
    %v137 = vld [vmem:[#allocation5] sm:$0xf]
    %v138 = vld [vmem:[#allocation5 + $0x4] sm:$0xf]
    %v139 = vld [vmem:[#allocation5 + $0x8] sm:$0xf]
    %v140 = vld [vmem:[#allocation5 + $0xc] sm:$0xf]
    %v141 = vld [vmem:[#allocation5 + $0x10] sm:$0xf]
    %v142 = vld [vmem:[#allocation5 + $0x14] sm:$0xf]
    %v143 = vld [vmem:[#allocation5 + $0x18] sm:$0xf]
    %v144 = vld [vmem:[#allocation5 + $0x1c] sm:$0xf]
    %v145 = vld [vmem:[#allocation5 + $0x20] sm:$0xf]
    %v146 = vld [vmem:[#allocation5 + $0x24] sm:$0xf]
    %v147 = vld [vmem:[#allocation5 + $0x28] sm:$0xf]
    %v148 = vld [vmem:[#allocation5 + $0x2c] sm:$0xf]
    %v149 = vld [vmem:[#allocation5 + $0x30] sm:$0xf]
    %v150 = vld [vmem:[#allocation5 + $0x34] sm:$0xf]
    %v151 = vld [vmem:[#allocation5 + $0x38] sm:$0xf]
    %v152 = vld [vmem:[#allocation5 + $0x3c] sm:$0xf]
    %v153 = vld [vmem:[%s4] sm:$0x1]
    %v155 = vperm.slane %v153, 0
    %v173 = vunpack.c.l.b16 %v137
    %v174 = vunpack.c.l.b16 %v138
    %v175 = vunpack.c.l.b16 %v139
    %v176 = vunpack.c.l.b16 %v140
    %v177 = vunpack.c.l.b16 %v141
    %v178 = vunpack.c.l.b16 %v142
    %v179 = vunpack.c.l.b16 %v143
    %v180 = vunpack.c.l.b16 %v144
    %v181 = vunpack.c.l.b16 %v145
    %v182 = vunpack.c.l.b16 %v146
    %v183 = vunpack.c.l.b16 %v147
    %v184 = vunpack.c.l.b16 %v148
    %v185 = vunpack.c.l.b16 %v149
    %v186 = vunpack.c.l.b16 %v150
    %v187 = vunpack.c.l.b16 %v151
    %v188 = vunpack.c.l.b16 %v152
    %v189 = vpack.c.b16 %v174, %v173
    %v190 = vpack.c.b16 %v176, %v175
    %v191 = vpack.c.b16 %v178, %v177
    %v192 = vpack.c.b16 %v180, %v179
    %v193 = vpack.c.b16 %v182, %v181
    %v194 = vpack.c.b16 %v184, %v183
    %v195 = vpack.c.b16 %v186, %v185
    %v196 = vpack.c.b16 %v188, %v187
    %205 = vmatpush.bf16.msra.mxu0 %v196
    %206 = vmatpush.bf16.msra.mxu0 %v195
    %207 = vmatpush.bf16.msra.mxu0 %v194
    %208 = vmatpush.bf16.msra.mxu0 %v193
    %209 = vmatpush.bf16.msra.mxu0 %v192
    %210 = vmatpush.bf16.msra.mxu0 %v191
    %211 = vmatpush.bf16.msra.mxu0 %v190
    %212 = vmatpush.bf16.msra.mxu0 %v189
    %213 = vmatmul.bf16.gmra.mxu0 %v136
    %v214 = vpop.f32.mrf.mxu0
    %v215 = vadd.f32 %v155, %v214
    %v216 = vpop.f32.mrf.mxu0
    %217 = vdwg.mxu0
    %v218 = vmax.f32 %v215, 0.0
    %219 = vst [vmem:[#allocation7] sm:$0xff] %v218
    // Predicated region
    $region30: #{dnn_forward.1} parent=1 // pred_check
      _
    $region31: #{dnn_forward.1} parent=1 // pred_check_branch
      %221 = sbr.rel (0) target = $region33
    $region32: #{dnn_forward.1} parent=1 // pred_region
      %223 = vsyncadd [#allocation4], 0
      %s225 = sshll.u32 [#allocation7], 4
      %s226 = int_to_ptr.vmem [resolvable:$true] %s225
      %s227 = sshll.u32 %s5, 4
      %s228 = int_to_ptr.hbm [resolvable:$true] %s227
      %230 = dma.vmem_to_hbm [thread:$0]  %s226, 128, %s228, [#allocation4]
    $region33: #{dnn_forward.1} parent=1 // pred_fallthru
      _
    // Predicated region
    $region34: #{dnn_forward.1} parent=1 // pred_check
      _
    $region35: #{dnn_forward.1} parent=1 // pred_check_branch
      %232 = sbr.rel (0) target = $region37
    $region36: #{dnn_forward.1} parent=1 // pred_region
      %234 = dma.done [#allocation4], 128
    $region37: #{dnn_forward.1} parent=1 // pred_fallthru
      _
    %235 = vsyncpa [#allocation3], 1
    %236 = vsyncpa [#allocation6], 1
    %237 = vsyncpa [#allocation4], 1

// kernel: dnn_forward.1
$region0: #{dnn_forward.1}
  #allocation0 [shape = 'u32[]', space=smem, size = 0x4, offset = 0x4, fixed_abs, tag = 'smem constant byte address 0x4 - core index']
  #allocation1 [shape = 'u32[72,128]{1,0:T(1,128)}', space=vmem, size = 0x9000, scoped, tag = 'internal scratch']
  %s0 = inlined_call_operand.vmem [shape: bf16[8,128], index: 0, kind: input, shape index: {}]
  %s1 = inlined_call_operand.hbm [shape: bf16[128,128], index: 1, kind: input, shape index: {}]
  %s2 = inlined_call_operand.vmem [shape: f32[1,128], index: 2, kind: input, shape index: {}]
  %s3 = inlined_call_operand.hbm [shape: bf16[128,128], index: 3, kind: input, shape index: {}]
  %s4 = inlined_call_operand.vmem [shape: f32[1,128], index: 4, kind: input, shape index: {}]
  %s5 = inlined_call_operand.hbm [shape: f32[8,128], index: 5, kind: output, shape index: {}]
  %s6 = sld [smem:[#allocation0]]
  $region38: #{dnn_forward.1} parent=0
    _
  %s8 = ssub.s32 1, %s6
  %s9 = scalar_select 0, %s8, %s6
  $region1: #{dnn_forward.1} parent=0
    #allocation2 [shape = 'u8[32768]{0}', space=vmem, size = 0x8000, scoped, tag = 'input window, operand 1, single buffered']
    #allocation3 [shape = 's32[1]{0}', space=sflag, size = 0x4, scoped, tag = 'scoped memory for dnn_forward.1']
    #allocation4 [shape = 's32[1]{0}', space=sflag, size = 0x4, scoped, tag = 'scoped memory for dnn_forward.1']
    #allocation5 [shape = 'u8[32768]{0}', space=vmem, size = 0x8000, scoped, tag = 'input window, operand 3, single buffered']
    #allocation6 [shape = 's32[1]{0}', space=sflag, size = 0x4, scoped, tag = 'scoped memory for dnn_forward.1']
    #allocation7 [shape = 'u8[4096]{0}', space=vmem, size = 0x1000, scoped, tag = 'output window, operand 0, single buffered']
    %10 = vsyncpa [#allocation3], 0
    %11 = vsyncpa [#allocation6], 0
    %12 = vsyncpa [#allocation4], 0
    // Predicated region
    $region2: #{dnn_forward.1} parent=1 // pred_check
      _
    $region3: #{dnn_forward.1} parent=1 // pred_check_branch
      %14 = sbr.rel (0) target = $region5
    $region4: #{dnn_forward.1} parent=1 // pred_region
      _
    $region5: #{dnn_forward.1} parent=1 // pred_fallthru
      _
    // Predicated region
    $region6: #{dnn_forward.1} parent=1 // pred_check
      _
    $region7: #{dnn_forward.1} parent=1 // pred_check_branch
      %16 = sbr.rel (0) target = $region9
    $region8: #{dnn_forward.1} parent=1 // pred_region
      %18 = vsyncadd [#allocation3], 0
      %s19 = sshll.u32 %s1, 4
      %s20 = int_to_ptr.hbm [resolvable:$true] %s19
      %s21 = sshll.u32 [#allocation2], 4
      %s22 = int_to_ptr.vmem [resolvable:$true] %s21
      %27 = dma.hbm_to_vmem [thread:$0]  %s20, 1024, %s22, [#allocation3], 64, 64, 4
    $region9: #{dnn_forward.1} parent=1 // pred_fallthru
      _
    // Predicated region
    $region10: #{dnn_forward.1} parent=1 // pred_check
      _
    $region11: #{dnn_forward.1} parent=1 // pred_check_branch
      %29 = sbr.rel (0) target = $region13
    $region12: #{dnn_forward.1} parent=1 // pred_region
      _
    $region13: #{dnn_forward.1} parent=1 // pred_fallthru
      _
    // Predicated region
    $region14: #{dnn_forward.1} parent=1 // pred_check
      _
    $region15: #{dnn_forward.1} parent=1 // pred_check_branch
      %31 = sbr.rel (0) target = $region17
    $region16: #{dnn_forward.1} parent=1 // pred_region
      %33 = vsyncadd [#allocation6], 0
      %s34 = sshll.u32 %s3, 4
      %s35 = int_to_ptr.hbm [resolvable:$true] %s34
      %s36 = sshll.u32 [#allocation5], 4
      %s37 = int_to_ptr.vmem [resolvable:$true] %s36
      %42 = dma.hbm_to_vmem [thread:$0]  %s35, 1024, %s37, [#allocation6], 64, 64, 4
    $region17: #{dnn_forward.1} parent=1 // pred_fallthru
      _
    // Predicated region
    $region18: #{dnn_forward.1} parent=1 // pred_check
      _
    $region19: #{dnn_forward.1} parent=1 // pred_check_branch
      %44 = sbr.rel (0) target = $region21
    $region20: #{dnn_forward.1} parent=1 // pred_region
      _
    $region21: #{dnn_forward.1} parent=1 // pred_fallthru
      _
    // Predicated region
    $region22: #{dnn_forward.1} parent=1 // pred_check
      _
    $region23: #{dnn_forward.1} parent=1 // pred_check_branch
      %46 = sbr.rel (0) target = $region25
    $region24: #{dnn_forward.1} parent=1 // pred_region
      %48 = dma.done [#allocation3], 1024
    $region25: #{dnn_forward.1} parent=1 // pred_fallthru
      _
    // Predicated region
    $region26: #{dnn_forward.1} parent=1 // pred_check
      _
    $region27: #{dnn_forward.1} parent=1 // pred_check_branch
      %50 = sbr.rel (0) target = $region29
    $region28: #{dnn_forward.1} parent=1 // pred_region
      %52 = dma.done [#allocation6], 1024
    $region29: #{dnn_forward.1} parent=1 // pred_fallthru
      _
    %v53 = vld [vmem:[%s0] sm:$0xf]
    %v54 = vld [vmem:[#allocation2] sm:$0xf]
    %v55 = vld [vmem:[#allocation2 + $0x4] sm:$0xf]
    %v56 = vld [vmem:[#allocation2 + $0x8] sm:$0xf]
    %v57 = vld [vmem:[#allocation2 + $0xc] sm:$0xf]
    %v58 = vld [vmem:[#allocation2 + $0x10] sm:$0xf]
    %v59 = vld [vmem:[#allocation2 + $0x14] sm:$0xf]
    %v60 = vld [vmem:[#allocation2 + $0x18] sm:$0xf]
    %v61 = vld [vmem:[#allocation2 + $0x1c] sm:$0xf]
    %v62 = vld [vmem:[#allocation2 + $0x20] sm:$0xf]
    %v63 = vld [vmem:[#allocation2 + $0x24] sm:$0xf]
    %v64 = vld [vmem:[#allocation2 + $0x28] sm:$0xf]
    %v65 = vld [vmem:[#allocation2 + $0x2c] sm:$0xf]
    %v66 = vld [vmem:[#allocation2 + $0x30] sm:$0xf]
    %v67 = vld [vmem:[#allocation2 + $0x34] sm:$0xf]
    %v68 = vld [vmem:[#allocation2 + $0x38] sm:$0xf]
    %v69 = vld [vmem:[#allocation2 + $0x3c] sm:$0xf]
    %v70 = vld [vmem:[%s2] sm:$0x1]
    %v72 = vperm.slane %v70, 0
    %v90 = vunpack.c.l.b16 %v54
    %v91 = vunpack.c.l.b16 %v55
    %v92 = vunpack.c.l.b16 %v56
    %v93 = vunpack.c.l.b16 %v57
    %v94 = vunpack.c.l.b16 %v58
    %v95 = vunpack.c.l.b16 %v59
    %v96 = vunpack.c.l.b16 %v60
    %v97 = vunpack.c.l.b16 %v61
    %v98 = vunpack.c.l.b16 %v62
    %v99 = vunpack.c.l.b16 %v63
    %v100 = vunpack.c.l.b16 %v64
    %v101 = vunpack.c.l.b16 %v65
    %v102 = vunpack.c.l.b16 %v66
    %v103 = vunpack.c.l.b16 %v67
    %v104 = vunpack.c.l.b16 %v68
    %v105 = vunpack.c.l.b16 %v69
    %v106 = vpack.c.b16 %v91, %v90
    %v107 = vpack.c.b16 %v93, %v92
    %v108 = vpack.c.b16 %v95, %v94
    %v109 = vpack.c.b16 %v97, %v96
    %v110 = vpack.c.b16 %v99, %v98
    %v111 = vpack.c.b16 %v101, %v100
    %v112 = vpack.c.b16 %v103, %v102
    %v113 = vpack.c.b16 %v105, %v104
    %122 = vmatpush.bf16.msra.mxu0 %v113
    %123 = vmatpush.bf16.msra.mxu0 %v112
    %124 = vmatpush.bf16.msra.mxu0 %v111
    %125 = vmatpush.bf16.msra.mxu0 %v110
    %126 = vmatpush.bf16.msra.mxu0 %v109
    %127 = vmatpush.bf16.msra.mxu0 %v108
    %128 = vmatpush.bf16.msra.mxu0 %v107
    %129 = vmatpush.bf16.msra.mxu0 %v106
    %130 = vmatmul.bf16.gmra.mxu0 %v53
    %v131 = vpop.f32.mrf.mxu0
    %v132 = vadd.f32 %v72, %v131
    %v133 = vpop.f32.mrf.mxu0
    %134 = vdwg.mxu0
    %v135 = vmax.f32 %v132, 0.0
    %v136 = vpack.c.bf16 %v135, %v135
    %v137 = vld [vmem:[#allocation5] sm:$0xf]
    %v138 = vld [vmem:[#allocation5 + $0x4] sm:$0xf]
    %v139 = vld [vmem:[#allocation5 + $0x8] sm:$0xf]
    %v140 = vld [vmem:[#allocation5 + $0xc] sm:$0xf]
    %v141 = vld [vmem:[#allocation5 + $0x10] sm:$0xf]
    %v142 = vld [vmem:[#allocation5 + $0x14] sm:$0xf]
    %v143 = vld [vmem:[#allocation5 + $0x18] sm:$0xf]
    %v144 = vld [vmem:[#allocation5 + $0x1c] sm:$0xf]
    %v145 = vld [vmem:[#allocation5 + $0x20] sm:$0xf]
    %v146 = vld [vmem:[#allocation5 + $0x24] sm:$0xf]
    %v147 = vld [vmem:[#allocation5 + $0x28] sm:$0xf]
    %v148 = vld [vmem:[#allocation5 + $0x2c] sm:$0xf]
    %v149 = vld [vmem:[#allocation5 + $0x30] sm:$0xf]
    %v150 = vld [vmem:[#allocation5 + $0x34] sm:$0xf]
    %v151 = vld [vmem:[#allocation5 + $0x38] sm:$0xf]
    %v152 = vld [vmem:[#allocation5 + $0x3c] sm:$0xf]
    %v153 = vld [vmem:[%s4] sm:$0x1]
    %v155 = vperm.slane %v153, 0
    %v173 = vunpack.c.l.b16 %v137
    %v174 = vunpack.c.l.b16 %v138
    %v175 = vunpack.c.l.b16 %v139
    %v176 = vunpack.c.l.b16 %v140
    %v177 = vunpack.c.l.b16 %v141
    %v178 = vunpack.c.l.b16 %v142
    %v179 = vunpack.c.l.b16 %v143
    %v180 = vunpack.c.l.b16 %v144
    %v181 = vunpack.c.l.b16 %v145
    %v182 = vunpack.c.l.b16 %v146
    %v183 = vunpack.c.l.b16 %v147
    %v184 = vunpack.c.l.b16 %v148
    %v185 = vunpack.c.l.b16 %v149
    %v186 = vunpack.c.l.b16 %v150
    %v187 = vunpack.c.l.b16 %v151
    %v188 = vunpack.c.l.b16 %v152
    %v189 = vpack.c.b16 %v174, %v173
    %v190 = vpack.c.b16 %v176, %v175
    %v191 = vpack.c.b16 %v178, %v177
    %v192 = vpack.c.b16 %v180, %v179
    %v193 = vpack.c.b16 %v182, %v181
    %v194 = vpack.c.b16 %v184, %v183
    %v195 = vpack.c.b16 %v186, %v185
    %v196 = vpack.c.b16 %v188, %v187
    %205 = vmatpush.bf16.msra.mxu0 %v196
    %206 = vmatpush.bf16.msra.mxu0 %v195
    %207 = vmatpush.bf16.msra.mxu0 %v194
    %208 = vmatpush.bf16.msra.mxu0 %v193
    %209 = vmatpush.bf16.msra.mxu0 %v192
    %210 = vmatpush.bf16.msra.mxu0 %v191
    %211 = vmatpush.bf16.msra.mxu0 %v190
    %212 = vmatpush.bf16.msra.mxu0 %v189
    %213 = vmatmul.bf16.gmra.mxu0 %v136
    %v214 = vpop.f32.mrf.mxu0
    %v215 = vadd.f32 %v155, %v214
    %v216 = vpop.f32.mrf.mxu0
    %217 = vdwg.mxu0
    %v218 = vmax.f32 %v215, 0.0
    %219 = vst [vmem:[#allocation7] sm:$0xff] %v218
    // Predicated region
    $region30: #{dnn_forward.1} parent=1 // pred_check
      _
    $region31: #{dnn_forward.1} parent=1 // pred_check_branch
      %221 = sbr.rel (0) target = $region33
    $region32: #{dnn_forward.1} parent=1 // pred_region
      %223 = vsyncadd [#allocation4], 0
      %s225 = sshll.u32 [#allocation7], 4
      %s226 = int_to_ptr.vmem [resolvable:$true] %s225
      %s227 = sshll.u32 %s5, 4
      %s228 = int_to_ptr.hbm [resolvable:$true] %s227
      %230 = dma.vmem_to_hbm [thread:$0]  %s226, 128, %s228, [#allocation4]
    $region33: #{dnn_forward.1} parent=1 // pred_fallthru
      _
    // Predicated region
    $region34: #{dnn_forward.1} parent=1 // pred_check
      _
    $region35: #{dnn_forward.1} parent=1 // pred_check_branch
      %232 = sbr.rel (0) target = $region37
    $region36: #{dnn_forward.1} parent=1 // pred_region
      %234 = dma.done [#allocation4], 128
    $region37: #{dnn_forward.1} parent=1 // pred_fallthru
      _
    %235 = vsyncpa [#allocation3], 1
    %236 = vsyncpa [#allocation6], 1
    %237 = vsyncpa [#allocation4], 1

</llo_original>
